<compile_context>
chip_gen: v7x
topology: tpu7x:2x2x1
jax: 0.10.0
libtpu: 0.0.40
codegen_flags: <defaults>
</compile_context>

<pallas_src>
import jax
import jax.numpy as jnp
import numpy as np
from jax.experimental import pallas as pl
from jax.experimental.pallas import tpu as pltpu


def _make_decomp_kernel(L: int, kernel_size: int, pad_front: int,
                        b_tile: int, c_tile: int):
    """Per-(batch-tile, channel-tile) decomposition kernel (sizes static)."""
    Lp = L + kernel_size - 1
    pad_end = kernel_size // 2
    inv_k = 1.0 / float(kernel_size)

    def kernel(x_ref, res_ref, mean_ref, xpad_ref):
        # x_ref: (b_tile, L, c_tile) input block (original dtype).
        # xpad_ref: (b_tile, Lp, c_tile) scratch in the *input* dtype.
        x = x_ref[...]

        # Fused edge-replication padding, entirely in VMEM (no HBM pad array):
        #   rows [0, pad_front)             <- x[:, 0]    (front replication)
        #   rows [pad_front, pad_front+L)   <- x
        #   rows [pad_front+L, Lp)          <- x[:, L-1]  (end replication)
        xpad_ref[:, pad_front:pad_front + L, :] = x
        if pad_front > 0:
            xpad_ref[:, 0:pad_front, :] = jnp.broadcast_to(
                x[:, 0:1, :], (b_tile, pad_front, c_tile))
        if pad_end > 0:
            xpad_ref[:, pad_front + L:Lp, :] = jnp.broadcast_to(
                x[:, L - 1:L, :], (b_tile, pad_end, c_tile))

        # Accumulate in float32 regardless of input dtype.
        xpad = xpad_ref[...].astype(jnp.float32)  # (b_tile, Lp, c_tile)

        # Log-depth (doubling-tree) sliding-window sum.
        #   runs[r][:, i, :] == sum_{t=i}^{i+r-1} xpad[:, t, :]
        # Doubling: runs[2r][i] = runs[r][i] + runs[r][i+r]   (log2(K) steps)
        # Composition: window of length K built from the binary decomposition
        # of K (popcount(K)-1 extra adds).  Value slices along the sublane
        # axis are used for the shifts; a pltpu.roll formulation would move
        # them onto the XLU but slices lower portably and the kernel stays
        # HBM-bound either way.
        runs = {1: xpad}
        run = xpad
        run_len = 1
        while run_len * 2 <= kernel_size:
            new_len = Lp - 2 * run_len + 1
            run = run[:, :new_len, :] + run[:, run_len:run_len + new_len, :]
            run_len *= 2
            runs[run_len] = run

        acc = None
        offset = 0
        remaining = kernel_size
        r = run_len
        while remaining > 0:
            if remaining >= r:
                part = runs[r][:, offset:offset + L, :]
                acc = part if acc is None else acc + part
                offset += r
                remaining -= r
            r //= 2

        mean = (acc * inv_k).astype(mean_ref.dtype)
        mean_ref[...] = mean
        # Subtract the dtype-rounded mean in the input dtype, matching the
        # PyTorch module's `res = x - moving_mean`.
        res_ref[...] = (x - mean).astype(res_ref.dtype)

    return kernel


_TARGET_BLOCK_BYTES = 1 << 20  # ~1 MiB (f32 accounting) per input block.


def _pick_tiles(B: int, L: int, c_padded: int):
    """Pick (b_tile, c_tile): lane-dense, ~1 MiB blocks, >=2 grid steps."""
    row_bytes = 4 * max(L, 1)

    # Lane-dense channel tile: largest multiple-of-128 divisor of the padded
    # channel count whose (L, c_tile) f32 slab stays under the target.
    c_tile = 128
    c = 256
    while c <= c_padded:
        if c_padded % c == 0 and row_bytes * c <= _TARGET_BLOCK_BYTES:
            c_tile = c
        c += 128

    # Batch tile: largest divisor of B keeping the block under the target.
    b_tile = 1
    for b in range(2, B + 1):
        if B % b == 0 and b * row_bytes * c_tile <= _TARGET_BLOCK_BYTES:
            b_tile = b

    # v7x has 2 TensorCores: make sure there are >=2 parallel grid steps when
    # the problem allows it (split channels first, then batch).
    if (B // b_tile) * (c_padded // c_tile) < 2:
        if c_padded > 128:
            for c in range(c_padded - 128, 127, -128):
                if c_padded % c == 0:
                    c_tile = c
                    break
        elif B > 1:
            for b in range(b_tile - 1, 0, -1):
                if B % b == 0:
                    b_tile = b
                    break
    return b_tile, c_tile


def series_decomp(x: jax.Array, kernel_size: int, *,
                  b_tile: int | None = None, c_tile: int | None = None):
    """Series decomposition: returns (res, moving_mean), both shaped like x.

    Semantics match the PyTorch module:
      front = x[:, 0:1, :] repeated (K-1)//2 times
      end   = x[:, -1:, :] repeated  K//2   times
      moving_mean = AvgPool1d(K, stride=1) over [front, x, end] along L
      res = x - moving_mean
    """
    B, L, C = x.shape
    pad_front = (kernel_size - 1) // 2
    Lp = L + kernel_size - 1

    # Lane-dense channels: pad C up to a multiple of 128 in the wrapper so
    # res/mean stores are unmasked full-lane stores; slice the pad off after.
    c_padded = max(128, -(-C // 128) * 128)
    x_in = x if c_padded == C else jnp.pad(
        x, ((0, 0), (0, 0), (0, c_padded - C)))

    auto_b, auto_c = _pick_tiles(B, L, c_padded)
    if b_tile is None:
        b_tile = auto_b
    if c_tile is None:
        c_tile = auto_c
    assert B % b_tile == 0, "batch tile must divide B"
    assert c_padded % c_tile == 0 and c_tile % 128 == 0, \
        "channel tile must be a multiple of 128 dividing padded C"

    kernel = _make_decomp_kernel(L, kernel_size, pad_front, b_tile, c_tile)

    spec = pl.BlockSpec((b_tile, L, c_tile), lambda b, c: (b, 0, c))

    res, mean = pl.pallas_call(
        kernel,
        out_shape=(
            jax.ShapeDtypeStruct((B, L, c_padded), x.dtype),  # res
            jax.ShapeDtypeStruct((B, L, c_padded), x.dtype),  # moving_mean
        ),
        grid_spec=pltpu.PrefetchScalarGridSpec(
            num_scalar_prefetch=0,
            grid=(B // b_tile, c_padded // c_tile),
            in_specs=[spec],
            out_specs=[spec, spec],
            scratch_shapes=[pltpu.VMEM((b_tile, Lp, c_tile), x.dtype)],
        ),
        compiler_params=pltpu.CompilerParams(
            dimension_semantics=("parallel", "parallel"),
            # Footprint ~= 7-8x the input block (<~8 MiB); 48 MiB gives ample
            # headroom and stays below v7x's 64 MiB physical VMEM.
            vmem_limit_bytes=48 * 1024 * 1024,
        ),
    )(x_in)

    if c_padded != C:
        res = res[:, :, :C]
        mean = mean[:, :, :C]
    return res, mean


def _reference(x, kernel_size):
    """Pure-JAX reference mirroring the PyTorch forward."""
    pad_front = (kernel_size - 1) // 2
    pad_end = kernel_size // 2
    front = jnp.repeat(x[:, 0:1, :], pad_front, axis=1)
    end = jnp.repeat(x[:, -1:, :], pad_end, axis=1)
    xpad = jnp.concatenate([front, x, end], axis=1)
    L = x.shape[1]
    windows = jnp.stack([xpad[:, j:j + L, :] for j in range(kernel_size)],
                        axis=0).astype(jnp.float32)
    mean = jnp.mean(windows, axis=0).astype(x.dtype)
    return x - mean, mean


if __name__ == "__main__":
    key = jax.random.PRNGKey(0)

    def _check(B, L, C, kernel_size, b_tile=None, c_tile=None):
        k = jax.random.fold_in(key, B * 100000 + L * 1000 + C + kernel_size)
        x = jax.random.normal(k, (B, L, C), dtype=jnp.float32)
        res, mean = series_decomp(x, kernel_size, b_tile=b_tile, c_tile=c_tile)
        jax.block_until_ready((res, mean))
        res_ref, mean_ref = _reference(x, kernel_size)
        np.testing.assert_allclose(np.asarray(res), np.asarray(res_ref),
                                   rtol=1e-5, atol=1e-5)
        np.testing.assert_allclose(np.asarray(mean), np.asarray(mean_ref),
                                   rtol=1e-5, atol=1e-5)

    # Small deterministic demo: B=2, L=16, C=32, K=5 (exercises the
    # channel-pad-to-128 path).
    _check(B=2, L=16, C=32, kernel_size=5)
    # Lane-dense channel-tiled path (two channel tiles), Autoformer-style K.
    _check(B=2, L=24, C=256, kernel_size=25, c_tile=128)
    # Even kernel size -> asymmetric front/end padding; single grid step.
    _check(B=1, L=16, C=128, kernel_size=4)

    print("KERNEL_OK")
</pallas_src>

<mosaic_0001>
module attributes {stable_mosaic.version = 11 : i64} {
  func.func @kernel(%arg0: i32, %arg1: i32, %arg2: memref<1x16x128xf32, #tpu.memory_space<vmem>>, %arg3: memref<1x16x128xf32, #tpu.memory_space<vmem>>, %arg4: memref<1x16x128xf32, #tpu.memory_space<vmem>>, %arg5: memref<1x20x128xf32, #tpu.memory_space<vmem>>) attributes {dimension_semantics = [#tpu.dimension_semantics<parallel>, #tpu.dimension_semantics<parallel>], iteration_bounds = array<i64: 2, 1>, scalar_prefetch = 0 : i64, scratch_operands = 1 : i64, tpu.core_type = #tpu.core_type<tc>, window_params = [{transform_indices = @transform_0, window_bounds = array<i64: 1, 16, 128>}, {transform_indices = @transform_1, window_bounds = array<i64: 1, 16, 128>}, {transform_indices = @transform_2, window_bounds = array<i64: 1, 16, 128>}]} {
    %c0 = arith.constant 0 : index
    %c0_0 = arith.constant 0 : index
    %c0_1 = arith.constant 0 : index
    %0 = vector.load %arg2[%c0, %c0_0, %c0_1] : memref<1x16x128xf32, #tpu.memory_space<vmem>>, vector<1x16x128xf32>
    %c0_2 = arith.constant 0 : index
    %c2 = arith.constant 2 : index
    %c0_3 = arith.constant 0 : index
    %1 = vector.load %arg5[%c0_2, %c2, %c0_3] : memref<1x20x128xf32, #tpu.memory_space<vmem>>, vector<1x16x128xf32>
    tpu.vector_store %arg5[%c0_2, %c2, %c0_3], %0 {strides = array<i32>} : memref<1x20x128xf32, #tpu.memory_space<vmem>>, vector<1x16x128xf32>,
    %2 = vector.extract_strided_slice %0 {offsets = [0, 0, 0], sizes = [1, 1, 128], strides = [1, 1, 1]} : vector<1x16x128xf32> to vector<1x1x128xf32>
    %3 = vector.shape_cast %2 : vector<1x1x128xf32> to vector<1x1x128xf32>
    %4 = vector.broadcast %3 : vector<1x1x128xf32> to vector<1x2x128xf32>
    %c0_4 = arith.constant 0 : index
    %c0_5 = arith.constant 0 : index
    %c0_6 = arith.constant 0 : index
    %5 = vector.load %arg5[%c0_4, %c0_5, %c0_6] : memref<1x20x128xf32, #tpu.memory_space<vmem>>, vector<1x2x128xf32>
    tpu.vector_store %arg5[%c0_4, %c0_5, %c0_6], %4 {strides = array<i32>} : memref<1x20x128xf32, #tpu.memory_space<vmem>>, vector<1x2x128xf32>,
    %6 = vector.extract_strided_slice %0 {offsets = [0, 15, 0], sizes = [1, 1, 128], strides = [1, 1, 1]} : vector<1x16x128xf32> to vector<1x1x128xf32>
    %7 = vector.shape_cast %6 : vector<1x1x128xf32> to vector<1x1x128xf32>
    %8 = vector.broadcast %7 : vector<1x1x128xf32> to vector<1x2x128xf32>
    %c0_7 = arith.constant 0 : index
    %c18 = arith.constant 18 : index
    %c0_8 = arith.constant 0 : index
    %9 = vector.load %arg5[%c0_7, %c18, %c0_8] : memref<1x20x128xf32, #tpu.memory_space<vmem>>, vector<1x2x128xf32>
    tpu.vector_store %arg5[%c0_7, %c18, %c0_8], %8 {strides = array<i32>} : memref<1x20x128xf32, #tpu.memory_space<vmem>>, vector<1x2x128xf32>,
    %c0_9 = arith.constant 0 : index
    %c0_10 = arith.constant 0 : index
    %c0_11 = arith.constant 0 : index
    %10 = vector.load %arg5[%c0_9, %c0_10, %c0_11] : memref<1x20x128xf32, #tpu.memory_space<vmem>>, vector<1x20x128xf32>
    %11 = vector.extract_strided_slice %10 {offsets = [0, 0, 0], sizes = [1, 19, 128], strides = [1, 1, 1]} : vector<1x20x128xf32> to vector<1x19x128xf32>
    %12 = vector.extract_strided_slice %10 {offsets = [0, 1, 0], sizes = [1, 19, 128], strides = [1, 1, 1]} : vector<1x20x128xf32> to vector<1x19x128xf32>
    %13 = arith.addf %11, %12 : vector<1x19x128xf32>
    %14 = vector.extract_strided_slice %13 {offsets = [0, 0, 0], sizes = [1, 17, 128], strides = [1, 1, 1]} : vector<1x19x128xf32> to vector<1x17x128xf32>
    %15 = vector.extract_strided_slice %13 {offsets = [0, 2, 0], sizes = [1, 17, 128], strides = [1, 1, 1]} : vector<1x19x128xf32> to vector<1x17x128xf32>
    %16 = arith.addf %14, %15 : vector<1x17x128xf32>
    %17 = vector.extract_strided_slice %16 {offsets = [0, 0, 0], sizes = [1, 16, 128], strides = [1, 1, 1]} : vector<1x17x128xf32> to vector<1x16x128xf32>
    %18 = vector.extract_strided_slice %10 {offsets = [0, 4, 0], sizes = [1, 16, 128], strides = [1, 1, 1]} : vector<1x20x128xf32> to vector<1x16x128xf32>
    %19 = arith.addf %17, %18 : vector<1x16x128xf32>
    %cst = arith.constant 2.000000e-01 : f32
    %20 = vector.broadcast %cst : f32 to vector<1x16x128xf32>
    %21 = arith.mulf %19, %20 : vector<1x16x128xf32>
    %c0_12 = arith.constant 0 : index
    %c0_13 = arith.constant 0 : index
    %c0_14 = arith.constant 0 : index
    %22 = vector.load %arg4[%c0_12, %c0_13, %c0_14] : memref<1x16x128xf32, #tpu.memory_space<vmem>>, vector<1x16x128xf32>
    tpu.vector_store %arg4[%c0_12, %c0_13, %c0_14], %21 {strides = array<i32>} : memref<1x16x128xf32, #tpu.memory_space<vmem>>, vector<1x16x128xf32>,
    %23 = arith.subf %0, %21 : vector<1x16x128xf32>
    %c0_15 = arith.constant 0 : index
    %c0_16 = arith.constant 0 : index
    %c0_17 = arith.constant 0 : index
    %24 = vector.load %arg3[%c0_15, %c0_16, %c0_17] : memref<1x16x128xf32, #tpu.memory_space<vmem>>, vector<1x16x128xf32>
    tpu.vector_store %arg3[%c0_15, %c0_16, %c0_17], %23 {strides = array<i32>} : memref<1x16x128xf32, #tpu.memory_space<vmem>>, vector<1x16x128xf32>,
    return
  }
  func.func @transform_0(%arg0: i32, %arg1: i32) -> (i32, i32, i32) {
    %c0_i32 = arith.constant 0 : i32
    %c0_i32_0 = arith.constant 0 : i32
    return %arg0, %c0_i32, %arg1 : i32, i32, i32
  }
  func.func @transform_1(%arg0: i32, %arg1: i32) -> (i32, i32, i32) {
    %c0_i32 = arith.constant 0 : i32
    %c0_i32_0 = arith.constant 0 : i32
    return %arg0, %c0_i32, %arg1 : i32, i32, i32
  }
  func.func @transform_2(%arg0: i32, %arg1: i32) -> (i32, i32, i32) {
    %c0_i32 = arith.constant 0 : i32
    %c0_i32_0 = arith.constant 0 : i32
    return %arg0, %c0_i32, %arg1 : i32, i32, i32
  }
}

</mosaic_0001>

<llo_original>
// kernel: tpu_custom_call.1
$region0: #{tpu_custom_call.1}
  #allocation0 [shape = 'u32[]', space=smem, size = 0x4, offset = 0x4, fixed_abs, tag = 'smem constant byte address 0x4 - core index']
  #allocation1 [shape = 'u32[144,128]{1,0:T(1,128)}', space=vmem, size = 0x12000, scoped, tag = 'internal scratch']
  #allocation2 [shape = 'f32[1,20,128]{2,1,0:T(8,128)}', space=vmem, size = 0x3000, scoped, tag = 'scratch operand']
  %s0 = inlined_call_operand.hbm [shape: f32[2,16,128], index: 0, kind: input, shape index: {}]
  %s1 = inlined_call_operand.hbm [shape: f32[2,16,128], index: 1, kind: output, shape index: {0}]
  %s2 = inlined_call_operand.hbm [shape: f32[2,16,128], index: 2, kind: output, shape index: {1}]
  %3 = xla_tuple %s1, %s2
  %s4 = sld [smem:[#allocation0]]
  $region49: #{tpu_custom_call.1} parent=0
    _
  %s6 = ssub.s32 1, %s4
  %s7 = scalar_select 0, %s6, %s4
  $region1: #{tpu_custom_call.1} parent=0
    #allocation3 [shape = 'u8[16384]{0}', space=vmem, size = 0x4000, scoped, tag = 'input window, operand 0']
    #allocation4 [shape = 's32[2]{0}', space=sflag, size = 0x8, scoped, tag = 'scoped memory for tpu_custom_call.1']
    #allocation5 [shape = 's32[2]{0}', space=sflag, size = 0x8, scoped, tag = 'scoped memory for tpu_custom_call.1']
    #allocation6 [shape = 'u8[16384]{0}', space=vmem, size = 0x4000, scoped, tag = 'output window, operand 0']
    #allocation7 [shape = 'u8[16384]{0}', space=vmem, size = 0x4000, scoped, tag = 'output window, operand 1']
    #allocation8 [shape = 's32[2]{0}', space=sflag, size = 0x8, scoped, tag = 'scoped memory for tpu_custom_call.1']
    %8 = vsyncpa [#allocation4], 0
    %s9 = scalar_lea.sflag [#allocation4], 1
    %10 = vsyncpa %s9, 0
    %11 = vsyncpa [#allocation5], 0
    %s12 = scalar_lea.sflag [#allocation5], 1
    %13 = vsyncpa %s12, 0
    %14 = vsyncpa [#allocation8], 0
    %s15 = scalar_lea.sflag [#allocation8], 1
    %16 = vsyncpa %s15, 0
    loop: start=0, step=1, limit=4
    $region2: #{tpu_custom_call.1} parent=1 // loop_pre_header
      _
    $region3: #{tpu_custom_call.1} parent=1 // loop_header
      %s18 = sphi 0, %s22
      %p19 = scmp.ge.s32.totalorder %s18, 4
      %s25 = sphi 0, %s37
      %s26 = sphi 0, %s33
      %s27 = sphi 0, %s25
      %s28 = sphi 0, %s26
      %s29 = sphi 0, %s27
      %s30 = sphi 0, %s28
      %s42 = sphi 0, %s44
      %s45 = sphi 0, %s42
      %s46 = sphi 0, %s45
      %s62 = sphi 0, %s46
      %s70 = sphi 0, %s72
      %s73 = sphi 0, %s70
      %s74 = sphi 0, %s73
      %s90 = sphi 0, %s74
      %s98 = sphi 0, %s100
      %s101 = sphi 0, %s98
      %s102 = sphi 0, %s101
      %s118 = sphi 0, %s102
    $region4: #{tpu_custom_call.1} parent=1 // loop_header_branch
      %21 = sbr.rel (%p19) target = $region8
    $region5: #{tpu_custom_call.1} parent=1 // loop_body
      %s23 = ssub.s32 %s18, 1
      %s24 = ssub.s32 %s18, 2
      %s31 = sadd.s32 1, %s26
      %p32 = scmp.ge.s32.totalorder %s31, 1
      %s33 = scalar_select %p32, 0, %s31
      %s34 = sadd.s32 1, %s25
      %s35 = scalar_select %p32, %s34, %s25
      %p36 = scmp.ge.s32.totalorder %s35, 2
      %s37 = scalar_select %p36, 0, %s35
      %s38 = ssub.s32 %s25, %s37
      %s39 = ssub.s32 %s26, %s33
      %s40 = sor.u32 %s38, %s39
      %p41 = scmp.eq.s32.totalorder %s40, 0
      %s43 = sadd.s32 %s42, 1
      %s44 = scalar_select %p41, %s42, %s43
      %p47 = pneg %p41
      %p48 = scmp.eq.s32.totalorder %s18, 1
      %p49 = por %p47, %p48
      %p50 = scmp.ne.s32.totalorder %s42, %s45
      %p51 = scmp.eq.s32.totalorder %s18, 0
      %p52 = por %p50, %p51
      %p53 = scmp.ne.s32.totalorder %s42, %s45
      %p54 = scmp.eq.s32.totalorder %s23, 1
      %p55 = por %p53, %p54
      %p56 = scmp.ne.s32.totalorder %s45, %s46
      %p57 = scmp.eq.s32.totalorder %s23, 0
      %p58 = por %p56, %p57
      %p59 = scmp.ne.s32.totalorder %s45, %s46
      %p60 = scmp.eq.s32.totalorder %s24, 1
      %p61 = por %p59, %p60
      %p63 = scmp.ne.s32.totalorder %s46, %s62
      %p64 = scmp.eq.s32.totalorder %s24, 0
      %p65 = por %p63, %p64
      %s66 = ssub.s32 %s25, %s37
      %s67 = ssub.s32 %s26, %s33
      %s68 = sor.u32 %s66, %s67
      %p69 = scmp.eq.s32.totalorder %s68, 0
      %s71 = sadd.s32 %s70, 1
      %s72 = scalar_select %p69, %s70, %s71
      %p75 = pneg %p69
      %p76 = scmp.eq.s32.totalorder %s18, 1
      %p77 = por %p75, %p76
      %p78 = scmp.ne.s32.totalorder %s70, %s73
      %p79 = scmp.eq.s32.totalorder %s18, 0
      %p80 = por %p78, %p79
      %p81 = scmp.ne.s32.totalorder %s70, %s73
      %p82 = scmp.eq.s32.totalorder %s23, 1
      %p83 = por %p81, %p82
      %p84 = scmp.ne.s32.totalorder %s73, %s74
      %p85 = scmp.eq.s32.totalorder %s23, 0
      %p86 = por %p84, %p85
      %p87 = scmp.ne.s32.totalorder %s73, %s74
      %p88 = scmp.eq.s32.totalorder %s24, 1
      %p89 = por %p87, %p88
      %p91 = scmp.ne.s32.totalorder %s74, %s90
      %p92 = scmp.eq.s32.totalorder %s24, 0
      %p93 = por %p91, %p92
      %s94 = ssub.s32 %s25, %s37
      %s95 = ssub.s32 %s26, %s33
      %s96 = sor.u32 %s94, %s95
      %p97 = scmp.eq.s32.totalorder %s96, 0
      %s99 = sadd.s32 %s98, 1
      %s100 = scalar_select %p97, %s98, %s99
      %p103 = pneg %p97
      %p104 = scmp.eq.s32.totalorder %s18, 1
      %p105 = por %p103, %p104
      %p106 = scmp.ne.s32.totalorder %s98, %s101
      %p107 = scmp.eq.s32.totalorder %s18, 0
      %p108 = por %p106, %p107
      %p109 = scmp.ne.s32.totalorder %s98, %s101
      %p110 = scmp.eq.s32.totalorder %s23, 1
      %p111 = por %p109, %p110
      %p112 = scmp.ne.s32.totalorder %s101, %s102
      %p113 = scmp.eq.s32.totalorder %s23, 0
      %p114 = por %p112, %p113
      %p115 = scmp.ne.s32.totalorder %s101, %s102
      %p116 = scmp.eq.s32.totalorder %s24, 1
      %p117 = por %p115, %p116
      %p119 = scmp.ne.s32.totalorder %s102, %s118
      %p120 = scmp.eq.s32.totalorder %s24, 0
      %p121 = por %p119, %p120
      %p122 = scmp.le.s32.totalorder 1, %s18
      %p123 = scmp.lt.s32.totalorder %s18, 3
      %p124 = pnand %p122, %p123
      %p125 = pneg %p124
      // Predicated region
      $region9: #{tpu_custom_call.1} parent=5 // pred_check
        _
      $region10: #{tpu_custom_call.1} parent=5 // pred_check_branch
        %127 = sbr.rel (%p124) target = $region12
      $region11: #{tpu_custom_call.1} parent=5 // pred_region
        %s128 = ssub.s32 %s18, 1
      $region12: #{tpu_custom_call.1} parent=5 // pred_fallthru
        _
      %p129 = scmp.lt.s32.totalorder %s18, 2
      // Predicated region
      $region13: #{tpu_custom_call.1} parent=5 // pred_check
        %p130 = pneg %p129
      $region14: #{tpu_custom_call.1} parent=5 // pred_check_branch
        %132 = sbr.rel (%p130) target = $region16
      $region15: #{tpu_custom_call.1} parent=5 // pred_region
        // Predicated region
        $region17: #{tpu_custom_call.1} parent=15 // pred_check
          %p133 = pneg %p52
        $region18: #{tpu_custom_call.1} parent=15 // pred_check_branch
          %135 = sbr.rel (%p133) target = $region20
        $region19: #{tpu_custom_call.1} parent=15 // pred_region
          %s136 = sand.u32 %s42, 1
          %s137 = scalar_lea.sflag [#allocation4], %s136
          %s138 = sand.u32 %s42, 1
          %s139 = smul.addr %s138, 16
          %s140 = scalar_lea.vmem [#allocation3], %s139
          %s142 = ssub.s32 256, 256
          %143 = vsyncadd %s137, %s142
          %s144 = smul.addr %s25, 2
          %s145 = sadd.s32 %s26, %s144
          %s146 = smul.addr %s145, 128
          %s147 = scalar_lea.hbm %s0, %s146
          %s148 = sshll.u32 %s140, 4
          %s149 = int_to_ptr.vmem [resolvable:$true] %s148
          %154 = dma.hbm_to_vmem [thread:$0]  %s147, 256, %s149, %s137, 128, 128, 8
        $region20: #{tpu_custom_call.1} parent=15 // pred_fallthru
          _
      $region16: #{tpu_custom_call.1} parent=5 // pred_fallthru
        _
      %p155 = scmp.le.s32.totalorder 1, %s18
      %p156 = scmp.lt.s32.totalorder %s18, 3
      %p157 = pnand %p155, %p156
      %p158 = pneg %p157
      // Predicated region
      $region21: #{tpu_custom_call.1} parent=5 // pred_check
        _
      $region22: #{tpu_custom_call.1} parent=5 // pred_check_branch
        %160 = sbr.rel (%p157) target = $region24
      $region23: #{tpu_custom_call.1} parent=5 // pred_region
        %s161 = ssub.s32 %s18, 1
        %s162 = sand.u32 %s45, 1
        %s163 = scalar_lea.sflag [#allocation4], %s162
        %s164 = sand.u32 %s45, 1
        %s165 = smul.addr %s164, 16
        %s166 = scalar_lea.vmem [#allocation3], %s165
        // Predicated region
        $region25: #{tpu_custom_call.1} parent=23 // pred_check
          %p167 = pneg %p58
        $region26: #{tpu_custom_call.1} parent=23 // pred_check_branch
          %169 = sbr.rel (%p167) target = $region28
        $region27: #{tpu_custom_call.1} parent=23 // pred_region
          %170 = dma.done %s163, 256
        $region28: #{tpu_custom_call.1} parent=23 // pred_fallthru
          _
        %s171 = sand.u32 %s45, 1
        %s172 = scalar_lea.sflag [#allocation4], %s171
        %s173 = sand.u32 %s45, 1
        %s174 = smul.addr %s173, 16
        %s175 = scalar_lea.vmem [#allocation3], %s174
        %p176 = pneg %p58
        %p177 = pneg %p55
        %p178 = pneg %p86
        %p179 = pneg %p83
        %s180 = sand.u32 %s73, 1
        %s181 = scalar_lea.sflag [#allocation5], %s180
        %s182 = sand.u32 %s73, 1
        %s183 = smul.addr %s182, 16
        %s184 = scalar_lea.vmem [#allocation6], %s183
        %p185 = pneg %p114
        %p186 = pneg %p111
        %s187 = sand.u32 %s101, 1
        %s188 = scalar_lea.sflag [#allocation8], %s187
        %s189 = sand.u32 %s101, 1
        %s190 = smul.addr %s189, 16
        %s191 = scalar_lea.vmem [#allocation7], %s190
        %v192 = vld [vmem:[%s166] sm:$0xff]
        %v193 = vld [vmem:[%s166 + $0x8] sm:$0xff]
        %194 = vst [vmem:[#allocation2 + $0x2] sm:$0xff] %v192
        %195 = vst [vmem:[#allocation2 + $0xa] sm:$0xff] %v193
        %v196 = vlaneseq
        %v197 = vshrl.u32 %v196, 7
        %v198 = vsub.s32 0, %v197
        %v199 = vrot.slane %v192, %v198
        %200 = vst [vmem:[#allocation2] sm:$0x3] %v199
        %v201 = vlaneseq
        %v202 = vshrl.u32 %v201, 7
        %v203 = vsub.s32 7, %v202
        %v204 = vrot.slane %v193, %v203
        %205 = vst [vmem:[#allocation2 + $0x12] sm:$0x3] %v204
        %v206 = vld [vmem:[#allocation2] sm:$0xff]
        %v207 = vld [vmem:[#allocation2 + $0x8] sm:$0xff]
        %v208 = vld [vmem:[#allocation2 + $0x10] sm:$0xf]
        %vm212 = vcmask 1046528
        %v213 = vrot.slane %v206, 1
        %v214 = vrot.slane %v207, 1
        %v215 = vsel %vm212, %v213, %v214
        %v216 = vrot.slane %v208, 1
        %v217 = vsel %vm212, %v214, %v216
        %v221 = vadd.f32 %v206, %v215
        %v222 = vadd.f32 %v207, %v217
        %v223 = vadd.f32 %v208, %v216
        %vm227 = vcmask 1045504
        %v228 = vrot.slane %v221, 2
        %v229 = vrot.slane %v222, 2
        %v230 = vsel %vm227, %v228, %v229
        %v231 = vrot.slane %v223, 2
        %v232 = vsel %vm227, %v229, %v231
        %v235 = vadd.f32 %v221, %v230
        %v236 = vadd.f32 %v222, %v232
        %vm237 = vcmask 1043456
        %v238 = vrot.slane %v206, 4
        %v239 = vrot.slane %v207, 4
        %v240 = vsel %vm237, %v238, %v239
        %v241 = vrot.slane %v208, 4
        %v242 = vsel %vm237, %v239, %v241
        %v245 = vadd.f32 %v235, %v240
        %v246 = vadd.f32 %v236, %v242
        %v247 = vmul.f32 %v245, 0.2
        %v248 = vmul.f32 %v246, 0.2
        %249 = vst [vmem:[%s191] sm:$0xff] %v247
        %250 = vst [vmem:[%s191 + $0x8] sm:$0xff] %v248
        %v251 = vsub.f32 %v192, %v247
        %v252 = vsub.f32 %v193, %v248
        %253 = vst [vmem:[%s184] sm:$0xff] %v251
        %254 = vst [vmem:[%s184 + $0x8] sm:$0xff] %v252
        %s255 = sand.u32 %s73, 1
        %s256 = scalar_lea.sflag [#allocation5], %s255
        %s257 = sand.u32 %s73, 1
        %s258 = smul.addr %s257, 16
        %s259 = scalar_lea.vmem [#allocation6], %s258
        %s260 = sand.u32 %s101, 1
        %s261 = scalar_lea.sflag [#allocation8], %s260
        %s262 = sand.u32 %s101, 1
        %s263 = smul.addr %s262, 16
        %s264 = scalar_lea.vmem [#allocation7], %s263
        // Predicated region
        $region29: #{tpu_custom_call.1} parent=23 // pred_check
          %p265 = pneg %p83
        $region30: #{tpu_custom_call.1} parent=23 // pred_check_branch
          %267 = sbr.rel (%p265) target = $region32
        $region31: #{tpu_custom_call.1} parent=23 // pred_region
          %s269 = ssub.s32 256, 256
          %270 = vsyncadd %s256, %s269
          %s271 = smul.addr %s27, 2
          %s272 = sadd.s32 %s28, %s271
          %s273 = smul.addr %s272, 128
          %s274 = scalar_lea.hbm %s1, %s273
          %s275 = sshll.u32 %s259, 4
          %s276 = int_to_ptr.vmem [resolvable:$true] %s275
          %281 = dma.vmem_to_hbm [thread:$0]  %s276, 256, %s274, %s256, 128, 128, 8
        $region32: #{tpu_custom_call.1} parent=23 // pred_fallthru
          _
        // Predicated region
        $region33: #{tpu_custom_call.1} parent=23 // pred_check
          %p282 = pneg %p111
        $region34: #{tpu_custom_call.1} parent=23 // pred_check_branch
          %284 = sbr.rel (%p282) target = $region36
        $region35: #{tpu_custom_call.1} parent=23 // pred_region
          %s286 = ssub.s32 256, 256
          %287 = vsyncadd %s261, %s286
          %s288 = smul.addr %s27, 2
          %s289 = sadd.s32 %s28, %s288
          %s290 = smul.addr %s289, 128
          %s291 = scalar_lea.hbm %s2, %s290
          %s292 = sshll.u32 %s264, 4
          %s293 = int_to_ptr.vmem [resolvable:$true] %s292
          %298 = dma.vmem_to_hbm [thread:$0]  %s293, 256, %s291, %s261, 128, 128, 8
        $region36: #{tpu_custom_call.1} parent=23 // pred_fallthru
          _
      $region24: #{tpu_custom_call.1} parent=5 // pred_fallthru
        _
      %p299 = scmp.le.s32.totalorder 2, %s18
      // Predicated region
      $region37: #{tpu_custom_call.1} parent=5 // pred_check
        %p300 = pneg %p299
      $region38: #{tpu_custom_call.1} parent=5 // pred_check_branch
        %302 = sbr.rel (%p300) target = $region40
      $region39: #{tpu_custom_call.1} parent=5 // pred_region
        %s303 = ssub.s32 %s18, 2
        // Predicated region
        $region41: #{tpu_custom_call.1} parent=39 // pred_check
          %p304 = pneg %p89
        $region42: #{tpu_custom_call.1} parent=39 // pred_check_branch
          %306 = sbr.rel (%p304) target = $region44
        $region43: #{tpu_custom_call.1} parent=39 // pred_region
          %s307 = sand.u32 %s74, 1
          %s308 = scalar_lea.sflag [#allocation5], %s307
          %s309 = sand.u32 %s74, 1
          %s310 = smul.addr %s309, 16
          %s311 = scalar_lea.vmem [#allocation6], %s310
          %312 = dma.done %s308, 256
        $region44: #{tpu_custom_call.1} parent=39 // pred_fallthru
          _
        // Predicated region
        $region45: #{tpu_custom_call.1} parent=39 // pred_check
          %p313 = pneg %p117
        $region46: #{tpu_custom_call.1} parent=39 // pred_check_branch
          %315 = sbr.rel (%p313) target = $region48
        $region47: #{tpu_custom_call.1} parent=39 // pred_region
          %s316 = sand.u32 %s102, 1
          %s317 = scalar_lea.sflag [#allocation8], %s316
          %s318 = sand.u32 %s102, 1
          %s319 = smul.addr %s318, 16
          %s320 = scalar_lea.vmem [#allocation7], %s319
          %321 = dma.done %s317, 256
        $region48: #{tpu_custom_call.1} parent=39 // pred_fallthru
          _
      $region40: #{tpu_custom_call.1} parent=5 // pred_fallthru
        _
    $region6: #{tpu_custom_call.1} parent=1 // loop_footer
      %s22 = sadd.s32 1, %s18
    $region7: #{tpu_custom_call.1} parent=1 // loop_footer_branch
      %17 = sbr.rel target = $region3
    $region8: #{tpu_custom_call.1} parent=1 // loop_exit
      _
    %322 = vsyncpa [#allocation4], 1
    %s323 = scalar_lea.sflag [#allocation4], 1
    %324 = vsyncpa %s323, 1
    %325 = vsyncpa [#allocation5], 1
    %s326 = scalar_lea.sflag [#allocation5], 1
    %327 = vsyncpa %s326, 1
    %328 = vsyncpa [#allocation8], 1
    %s329 = scalar_lea.sflag [#allocation8], 1
    %330 = vsyncpa %s329, 1

</llo_original>
